<compile_context>
chip_gen: v5e
topology: v5e:2x2
jax: 0.10.0
libtpu: 0.0.40
codegen_flags: <defaults>
</compile_context>

<pallas_src>
import jax
import jax.numpy as jnp
from jax.experimental import pallas as pl
from jax.experimental.pallas import tpu as pltpu

NUM_CLASSES = 10
PADDED_OUT = 128        # lane-dense output width (multiple of 128)
IN_FEATURES = 28 * 28


def mlp_kernel(x_ref, w1_ref, b1_ref, w2_ref, b2_ref, w3_ref, b3_ref,
               w4_ref, b4_ref, o_ref):
    # Cast x f32 -> bf16 in-kernel (single f32 HBM read of x; no wrapper cast pass).
    x = x_ref[...].astype(jnp.bfloat16)
    # Layer 1: (TB, 784)bf16 @ (784, 128)bf16 -> f32 acc, bias+ReLU in f32.
    h = jnp.dot(x, w1_ref[...], preferred_element_type=jnp.float32)
    h = jnp.maximum(h + b1_ref[...], 0.0).astype(jnp.bfloat16)
    # Layer 2: (TB, 128) @ (128, 64)
    h = jnp.dot(h, w2_ref[...], preferred_element_type=jnp.float32)
    h = jnp.maximum(h + b2_ref[...], 0.0).astype(jnp.bfloat16)
    # Layer 3: (TB, 64) @ (64, 32)
    h = jnp.dot(h, w3_ref[...], preferred_element_type=jnp.float32)
    h = jnp.maximum(h + b3_ref[...], 0.0).astype(jnp.bfloat16)
    # Layer 4 (logits, zero-padded to 128 lanes): (TB, 32) @ (32, 128) -> bf16 store.
    h = jnp.dot(h, w4_ref[...], preferred_element_type=jnp.float32)
    o_ref[...] = (h + b4_ref[...]).astype(o_ref.dtype)


def prepare_params(params):
    """One-time parameter prep (hoisted out of the hot path):
       - transpose weights (out, in) -> (in, out), cast to bf16
       - biases -> (1, out) f32
       - zero-pad the final layer to PADDED_OUT output lanes."""
    (w1, b1), (w2, b2), (w3, b3), (w4, b4) = params
    w1t = w1.T.astype(jnp.bfloat16)
    w2t = w2.T.astype(jnp.bfloat16)
    w3t = w3.T.astype(jnp.bfloat16)
    w4p = jnp.zeros((w4.shape[1], PADDED_OUT), jnp.bfloat16)
    w4p = w4p.at[:, :NUM_CLASSES].set(w4.T.astype(jnp.bfloat16))
    b1r = b1.reshape(1, -1).astype(jnp.float32)
    b2r = b2.reshape(1, -1).astype(jnp.float32)
    b3r = b3.reshape(1, -1).astype(jnp.float32)
    b4p = jnp.zeros((1, PADDED_OUT), jnp.float32).at[:, :NUM_CLASSES].set(b4)
    return (w1t, b1r, w2t, b2r, w3t, b3r, w4p, b4p)


def _round_up(n, m):
    return ((n + m - 1) // m) * m


def _choose_tile(B, batch_tile):
    """Pick the batch tile: multiple of 16 (bf16 sublane packing), capped at
    batch_tile, and for mid/large batches shrunk so the grid has >= 2 steps
    (both v7x TensorCores get work; pipeline has something to overlap)."""
    tb = min(batch_tile, _round_up(B, 16))
    if B >= 256:
        half = max(128, _round_up((B + 1) // 2, 128))
        tb = min(tb, half)
    return max(tb, 16)


def digit_recognizer_forward(x, prepared_params, *, batch_tile=1024,
                             return_padded=False):
    """x: (B, 1, 28, 28) float32 (NCHW, like the PyTorch module).

    Returns (B, 10) float32 logits, or the raw (Bp, PADDED_OUT) bf16 padded tile
    if return_padded=True (lets a downstream argmax/softmax consume it directly
    and skip the post-slice copy).

    prepared_params must come from prepare_params().  batch_tile should be a
    multiple of 128 for large batches; cap it at ~2048 on v5e (16 MiB scoped
    VMEM) unless vmem_limit_bytes is raised."""
    B = x.shape[0]
    x_flat = x.reshape(B, IN_FEATURES).astype(jnp.float32)  # nn.Flatten(); cast to bf16 in-kernel

    tb = _choose_tile(B, batch_tile)
    Bp = _round_up(B, tb)
    if Bp != B:
        # Only hit when B is not a tile multiple; pads tail rows with zeros.
        x_flat = jnp.pad(x_flat, ((0, Bp - B), (0, 0)))

    w1t, b1r, w2t, b2r, w3t, b3r, w4p, b4p = prepared_params
    grid = (Bp // tb,)

    def rep(shape):
        # Full-array block with constant index_map: stays resident in VMEM
        # across all batch tiles (no re-DMA).
        return pl.BlockSpec(shape, lambda i: (0, 0))

    out_padded = pl.pallas_call(
        mlp_kernel,
        out_shape=jax.ShapeDtypeStruct((Bp, PADDED_OUT), jnp.bfloat16),
        grid_spec=pltpu.PrefetchScalarGridSpec(
            num_scalar_prefetch=0,
            grid=grid,
            in_specs=[
                pl.BlockSpec((tb, IN_FEATURES), lambda i: (i, 0)),
                rep(w1t.shape), rep(b1r.shape),
                rep(w2t.shape), rep(b2r.shape),
                rep(w3t.shape), rep(b3r.shape),
                rep(w4p.shape), rep(b4p.shape),
            ],
            out_specs=pl.BlockSpec((tb, PADDED_OUT), lambda i: (i, 0)),
        ),
        compiler_params=pltpu.CompilerParams(
            dimension_semantics=("parallel",)),
    )(x_flat, w1t, b1r, w2t, b2r, w3t, b3r, w4p, b4p)

    if return_padded:
        return out_padded
    # Strip batch padding and lane padding (logits live in the first 10 lanes).
    return out_padded[:B, :NUM_CLASSES].astype(jnp.float32)


def init_params(key):
    """Deterministic init mirroring nn.Linear defaults: U(-1/sqrt(fan_in), +1/sqrt(fan_in)).
    Weight shapes follow PyTorch convention (out_features, in_features)."""
    dims = [(128, IN_FEATURES), (64, 128), (32, 64), (NUM_CLASSES, 32)]
    params = []
    for (out_f, in_f) in dims:
        key, kw, kb = jax.random.split(key, 3)
        bound = 1.0 / jnp.sqrt(in_f)
        w = jax.random.uniform(kw, (out_f, in_f), jnp.float32, -bound, bound)
        b = jax.random.uniform(kb, (out_f,), jnp.float32, -bound, bound)
        params.append((w, b))
    return params


def reference_forward(x, params):
    """Pure-JAX f32 reference matching the PyTorch module exactly."""
    h = x.reshape(x.shape[0], -1)
    (w1, b1), (w2, b2), (w3, b3), (w4, b4) = params
    h = jnp.maximum(h @ w1.T + b1, 0.0)
    h = jnp.maximum(h @ w2.T + b2, 0.0)
    h = jnp.maximum(h @ w3.T + b3, 0.0)
    return h @ w4.T + b4


if __name__ == "__main__":
    key = jax.random.PRNGKey(0)
    kx, kp = jax.random.split(key)

    # Small MNIST-shaped batch (NCHW, like the PyTorch DataLoader). B=20 is
    # deliberately not a multiple of 16 so the batch-padding path is exercised.
    B = 20
    x = jax.random.normal(kx, (B, 1, 28, 28), jnp.float32)
    params = init_params(kp)
    prepared = prepare_params(params)   # hoisted one-time weight prep

    out = digit_recognizer_forward(x, prepared, batch_tile=1024)
    out = jax.block_until_ready(out)

    ref = reference_forward(x, params)
    assert out.shape == (B, NUM_CLASSES)
    # bf16 inputs/weights with f32 accumulation and bf16 logit writeback:
    # expect ~1e-3..1e-2 deviations vs the f32 reference.
    assert jnp.allclose(out, ref, atol=3e-2, rtol=3e-2), "Pallas output mismatch vs reference"

    print("KERNEL_OK")
</pallas_src>

<mosaic_0001>
module attributes {stable_mosaic.version = 11 : i64} {
  func.func @mlp_kernel(%arg0: i32, %arg1: memref<32x784xf32, #tpu.memory_space<vmem>>, %arg2: memref<784x128xbf16, #tpu.memory_space<vmem>>, %arg3: memref<1x128xf32, #tpu.memory_space<vmem>>, %arg4: memref<128x64xbf16, #tpu.memory_space<vmem>>, %arg5: memref<1x64xf32, #tpu.memory_space<vmem>>, %arg6: memref<64x32xbf16, #tpu.memory_space<vmem>>, %arg7: memref<1x32xf32, #tpu.memory_space<vmem>>, %arg8: memref<32x128xbf16, #tpu.memory_space<vmem>>, %arg9: memref<1x128xf32, #tpu.memory_space<vmem>>, %arg10: memref<32x128xbf16, #tpu.memory_space<vmem>>) attributes {dimension_semantics = [#tpu.dimension_semantics<parallel>], iteration_bounds = array<i64: 1>, scalar_prefetch = 0 : i64, scratch_operands = 0 : i64, tpu.core_type = #tpu.core_type<tc>, window_params = [{transform_indices = @transform_0, window_bounds = array<i64: 32, 784>}, {pipeline_mode = #tpu.pipeline_mode<synchronous>, transform_indices = @transform_1, window_bounds = array<i64: 784, 128>}, {pipeline_mode = #tpu.pipeline_mode<synchronous>, transform_indices = @transform_2, window_bounds = array<i64: 1, 128>}, {pipeline_mode = #tpu.pipeline_mode<synchronous>, transform_indices = @transform_3, window_bounds = array<i64: 128, 64>}, {pipeline_mode = #tpu.pipeline_mode<synchronous>, transform_indices = @transform_4, window_bounds = array<i64: 1, 64>}, {pipeline_mode = #tpu.pipeline_mode<synchronous>, transform_indices = @transform_5, window_bounds = array<i64: 64, 32>}, {pipeline_mode = #tpu.pipeline_mode<synchronous>, transform_indices = @transform_6, window_bounds = array<i64: 1, 32>}, {pipeline_mode = #tpu.pipeline_mode<synchronous>, transform_indices = @transform_7, window_bounds = array<i64: 32, 128>}, {pipeline_mode = #tpu.pipeline_mode<synchronous>, transform_indices = @transform_8, window_bounds = array<i64: 1, 128>}, {transform_indices = @transform_9, window_bounds = array<i64: 32, 128>}]} {
    %c0 = arith.constant 0 : index
    %c0_0 = arith.constant 0 : index
    %0 = vector.load %arg1[%c0, %c0_0] : memref<32x784xf32, #tpu.memory_space<vmem>>, vector<32x784xf32>
    %1 = arith.truncf %0 : vector<32x784xf32> to vector<32x784xbf16>
    %c0_1 = arith.constant 0 : index
    %c0_2 = arith.constant 0 : index
    %2 = vector.load %arg2[%c0_1, %c0_2] : memref<784x128xbf16, #tpu.memory_space<vmem>>, vector<784x128xbf16>
    %cst = arith.constant dense<0.000000e+00> : vector<32x128xf32>
    %3 = tpu.matmul %1, %2, %cst {dimension_numbers = #tpu.dot_dimension_numbers<[1], [0], [0], [1], [0, 0, 1, 1], [], []>} : vector<32x784xbf16>, vector<784x128xbf16>, vector<32x128xf32> -> vector<32x128xf32>
    %c0_3 = arith.constant 0 : index
    %c0_4 = arith.constant 0 : index
    %4 = vector.load %arg3[%c0_3, %c0_4] : memref<1x128xf32, #tpu.memory_space<vmem>>, vector<1x128xf32>
    %5 = vector.broadcast %4 : vector<1x128xf32> to vector<32x128xf32>
    %6 = arith.addf %3, %5 : vector<32x128xf32>
    %cst_5 = arith.constant 0.000000e+00 : f32
    %7 = vector.broadcast %cst_5 : f32 to vector<32x128xf32>
    %8 = arith.maximumf %6, %7 : vector<32x128xf32>
    %9 = arith.truncf %8 : vector<32x128xf32> to vector<32x128xbf16>
    %c0_6 = arith.constant 0 : index
    %c0_7 = arith.constant 0 : index
    %10 = vector.load %arg4[%c0_6, %c0_7] : memref<128x64xbf16, #tpu.memory_space<vmem>>, vector<128x64xbf16>
    %cst_8 = arith.constant dense<0.000000e+00> : vector<32x64xf32>
    %11 = tpu.matmul %9, %10, %cst_8 {dimension_numbers = #tpu.dot_dimension_numbers<[1], [0], [0], [1], [0, 0, 1, 1], [], []>} : vector<32x128xbf16>, vector<128x64xbf16>, vector<32x64xf32> -> vector<32x64xf32>
    %c0_9 = arith.constant 0 : index
    %c0_10 = arith.constant 0 : index
    %12 = vector.load %arg5[%c0_9, %c0_10] : memref<1x64xf32, #tpu.memory_space<vmem>>, vector<1x64xf32>
    %13 = vector.broadcast %12 : vector<1x64xf32> to vector<32x64xf32>
    %14 = arith.addf %11, %13 : vector<32x64xf32>
    %cst_11 = arith.constant 0.000000e+00 : f32
    %15 = vector.broadcast %cst_11 : f32 to vector<32x64xf32>
    %16 = arith.maximumf %14, %15 : vector<32x64xf32>
    %17 = arith.truncf %16 : vector<32x64xf32> to vector<32x64xbf16>
    %c0_12 = arith.constant 0 : index
    %c0_13 = arith.constant 0 : index
    %18 = vector.load %arg6[%c0_12, %c0_13] : memref<64x32xbf16, #tpu.memory_space<vmem>>, vector<64x32xbf16>
    %cst_14 = arith.constant dense<0.000000e+00> : vector<32x32xf32>
    %19 = tpu.matmul %17, %18, %cst_14 {dimension_numbers = #tpu.dot_dimension_numbers<[1], [0], [0], [1], [0, 0, 1, 1], [], []>} : vector<32x64xbf16>, vector<64x32xbf16>, vector<32x32xf32> -> vector<32x32xf32>
    %c0_15 = arith.constant 0 : index
    %c0_16 = arith.constant 0 : index
    %20 = vector.load %arg7[%c0_15, %c0_16] : memref<1x32xf32, #tpu.memory_space<vmem>>, vector<1x32xf32>
    %21 = vector.broadcast %20 : vector<1x32xf32> to vector<32x32xf32>
    %22 = arith.addf %19, %21 : vector<32x32xf32>
    %cst_17 = arith.constant 0.000000e+00 : f32
    %23 = vector.broadcast %cst_17 : f32 to vector<32x32xf32>
    %24 = arith.maximumf %22, %23 : vector<32x32xf32>
    %25 = arith.truncf %24 : vector<32x32xf32> to vector<32x32xbf16>
    %c0_18 = arith.constant 0 : index
    %c0_19 = arith.constant 0 : index
    %26 = vector.load %arg8[%c0_18, %c0_19] : memref<32x128xbf16, #tpu.memory_space<vmem>>, vector<32x128xbf16>
    %cst_20 = arith.constant dense<0.000000e+00> : vector<32x128xf32>
    %27 = tpu.matmul %25, %26, %cst_20 {dimension_numbers = #tpu.dot_dimension_numbers<[1], [0], [0], [1], [0, 0, 1, 1], [], []>} : vector<32x32xbf16>, vector<32x128xbf16>, vector<32x128xf32> -> vector<32x128xf32>
    %c0_21 = arith.constant 0 : index
    %c0_22 = arith.constant 0 : index
    %28 = vector.load %arg9[%c0_21, %c0_22] : memref<1x128xf32, #tpu.memory_space<vmem>>, vector<1x128xf32>
    %29 = vector.broadcast %28 : vector<1x128xf32> to vector<32x128xf32>
    %30 = arith.addf %27, %29 : vector<32x128xf32>
    %31 = arith.truncf %30 : vector<32x128xf32> to vector<32x128xbf16>
    %c0_23 = arith.constant 0 : index
    %c0_24 = arith.constant 0 : index
    %32 = vector.load %arg10[%c0_23, %c0_24] : memref<32x128xbf16, #tpu.memory_space<vmem>>, vector<32x128xbf16>
    tpu.vector_store %arg10[%c0_23, %c0_24], %31 {strides = array<i32>} : memref<32x128xbf16, #tpu.memory_space<vmem>>, vector<32x128xbf16>,
    return
  }
  func.func @transform_0(%arg0: i32) -> (i32, i32) {
    %c0_i32 = arith.constant 0 : i32
    %c0_i32_0 = arith.constant 0 : i32
    return %arg0, %c0_i32 : i32, i32
  }
  func.func @transform_1(%arg0: i32) -> (i32, i32) {
    %c0_i32 = arith.constant 0 : i32
    %c0_i32_0 = arith.constant 0 : i32
    %c0_i32_1 = arith.constant 0 : i32
    return %c0_i32, %c0_i32_0 : i32, i32
  }
  func.func @transform_2(%arg0: i32) -> (i32, i32) {
    %c0_i32 = arith.constant 0 : i32
    %c0_i32_0 = arith.constant 0 : i32
    %c0_i32_1 = arith.constant 0 : i32
    return %c0_i32, %c0_i32_0 : i32, i32
  }
  func.func @transform_3(%arg0: i32) -> (i32, i32) {
    %c0_i32 = arith.constant 0 : i32
    %c0_i32_0 = arith.constant 0 : i32
    %c0_i32_1 = arith.constant 0 : i32
    return %c0_i32, %c0_i32_0 : i32, i32
  }
  func.func @transform_4(%arg0: i32) -> (i32, i32) {
    %c0_i32 = arith.constant 0 : i32
    %c0_i32_0 = arith.constant 0 : i32
    %c0_i32_1 = arith.constant 0 : i32
    return %c0_i32, %c0_i32_0 : i32, i32
  }
  func.func @transform_5(%arg0: i32) -> (i32, i32) {
    %c0_i32 = arith.constant 0 : i32
    %c0_i32_0 = arith.constant 0 : i32
    %c0_i32_1 = arith.constant 0 : i32
    return %c0_i32, %c0_i32_0 : i32, i32
  }
  func.func @transform_6(%arg0: i32) -> (i32, i32) {
    %c0_i32 = arith.constant 0 : i32
    %c0_i32_0 = arith.constant 0 : i32
    %c0_i32_1 = arith.constant 0 : i32
    return %c0_i32, %c0_i32_0 : i32, i32
  }
  func.func @transform_7(%arg0: i32) -> (i32, i32) {
    %c0_i32 = arith.constant 0 : i32
    %c0_i32_0 = arith.constant 0 : i32
    %c0_i32_1 = arith.constant 0 : i32
    return %c0_i32, %c0_i32_0 : i32, i32
  }
  func.func @transform_8(%arg0: i32) -> (i32, i32) {
    %c0_i32 = arith.constant 0 : i32
    %c0_i32_0 = arith.constant 0 : i32
    %c0_i32_1 = arith.constant 0 : i32
    return %c0_i32, %c0_i32_0 : i32, i32
  }
  func.func @transform_9(%arg0: i32) -> (i32, i32) {
    %c0_i32 = arith.constant 0 : i32
    %c0_i32_0 = arith.constant 0 : i32
    return %arg0, %c0_i32 : i32, i32
  }
}

</mosaic_0001>

<llo_original>
// kernel: tpu_custom_call.1
$region0: #{tpu_custom_call.1}
  #allocation0 [shape = 'u32[]', space=smem, size = 0x4, offset = 0x4, fixed_abs, tag = 'smem constant byte address 0x4 - core index']
  #allocation1 [shape = 'u32[72,128]{1,0:T(1,128)}', space=vmem, size = 0x9000, scoped, tag = 'internal scratch']
  %s0 = inlined_call_operand.hbm [shape: f32[32,784], index: 0, kind: input, shape index: {}]
  %s1 = inlined_call_operand.hbm [shape: bf16[784,128], index: 1, kind: input, shape index: {}]
  %s2 = inlined_call_operand.vmem [shape: f32[1,128], index: 2, kind: input, shape index: {}]
  %s3 = inlined_call_operand.vmem [shape: bf16[128,64], index: 3, kind: input, shape index: {}]
  %s4 = inlined_call_operand.vmem [shape: f32[1,64], index: 4, kind: input, shape index: {}]
  %s5 = inlined_call_operand.vmem [shape: bf16[64,32], index: 5, kind: input, shape index: {}]
  %s6 = inlined_call_operand.vmem [shape: f32[1,32], index: 6, kind: input, shape index: {}]
  %s7 = inlined_call_operand.vmem [shape: bf16[32,128], index: 7, kind: input, shape index: {}]
  %s8 = inlined_call_operand.vmem [shape: f32[1,128], index: 8, kind: input, shape index: {}]
  %s9 = inlined_call_operand.hbm [shape: bf16[32,128], index: 9, kind: output, shape index: {}]
  %s10 = sld [smem:[#allocation0]]
  $region54: #{tpu_custom_call.1} parent=0
    _
  %s12 = ssub.s32 1, %s10
  %s13 = scalar_select 0, %s12, %s10
  $region1: #{tpu_custom_call.1} parent=0
    #allocation2 [shape = 'u8[114688]{0}', space=vmem, size = 0x1c000, scoped, tag = 'input window, operand 0, single buffered']
    #allocation3 [shape = 's32[1]{0}', space=sflag, size = 0x4, scoped, tag = 'scoped memory for tpu_custom_call.1']
    #allocation4 [shape = 's32[1]{0}', space=sflag, size = 0x4, scoped, tag = 'scoped memory for tpu_custom_call.1']
    #allocation5 [shape = 'u8[200704]{0}', space=vmem, size = 0x31000, scoped, tag = 'input window, operand 1, single buffered']
    #allocation6 [shape = 's32[1]{0}', space=sflag, size = 0x4, scoped, tag = 'scoped memory for tpu_custom_call.1']
    #allocation7 [shape = 'u8[8192]{0}', space=vmem, size = 0x2000, scoped, tag = 'output window, operand 0, single buffered']
    %14 = vsyncpa [#allocation3], 0
    %15 = vsyncpa [#allocation6], 0
    %16 = vsyncpa [#allocation4], 0
    // Predicated region
    $region2: #{tpu_custom_call.1} parent=1 // pred_check
      _
    $region3: #{tpu_custom_call.1} parent=1 // pred_check_branch
      %18 = sbr.rel (0) target = $region5
    $region4: #{tpu_custom_call.1} parent=1 // pred_region
      %20 = vsyncadd [#allocation3], 0
      %s21 = sshll.u32 %s0, 4
      %s22 = int_to_ptr.hbm [resolvable:$true] %s21
      %s23 = sshll.u32 [#allocation2], 4
      %s24 = int_to_ptr.vmem [resolvable:$true] %s23
      %29 = dma.hbm_to_vmem [thread:$0]  %s22, 3584, %s24, [#allocation3], 896, 896, 56
    $region5: #{tpu_custom_call.1} parent=1 // pred_fallthru
      _
    // Predicated region
    $region6: #{tpu_custom_call.1} parent=1 // pred_check
      _
    $region7: #{tpu_custom_call.1} parent=1 // pred_check_branch
      %31 = sbr.rel (0) target = $region9
    $region8: #{tpu_custom_call.1} parent=1 // pred_region
      %33 = vsyncadd [#allocation6], 0
      %s34 = sshll.u32 %s1, 4
      %s35 = int_to_ptr.hbm [resolvable:$true] %s34
      %s36 = sshll.u32 [#allocation5], 4
      %s37 = int_to_ptr.vmem [resolvable:$true] %s36
      %42 = dma.hbm_to_vmem [thread:$0]  %s35, 6272, %s37, [#allocation6], 64, 64, 4
    $region9: #{tpu_custom_call.1} parent=1 // pred_fallthru
      _
    // Predicated region
    $region10: #{tpu_custom_call.1} parent=1 // pred_check
      _
    $region11: #{tpu_custom_call.1} parent=1 // pred_check_branch
      %44 = sbr.rel (0) target = $region13
    $region12: #{tpu_custom_call.1} parent=1 // pred_region
      _
    $region13: #{tpu_custom_call.1} parent=1 // pred_fallthru
      _
    // Predicated region
    $region14: #{tpu_custom_call.1} parent=1 // pred_check
      _
    $region15: #{tpu_custom_call.1} parent=1 // pred_check_branch
      %46 = sbr.rel (0) target = $region17
    $region16: #{tpu_custom_call.1} parent=1 // pred_region
      _
    $region17: #{tpu_custom_call.1} parent=1 // pred_fallthru
      _
    // Predicated region
    $region18: #{tpu_custom_call.1} parent=1 // pred_check
      _
    $region19: #{tpu_custom_call.1} parent=1 // pred_check_branch
      %48 = sbr.rel (0) target = $region21
    $region20: #{tpu_custom_call.1} parent=1 // pred_region
      _
    $region21: #{tpu_custom_call.1} parent=1 // pred_fallthru
      _
    // Predicated region
    $region22: #{tpu_custom_call.1} parent=1 // pred_check
      _
    $region23: #{tpu_custom_call.1} parent=1 // pred_check_branch
      %50 = sbr.rel (0) target = $region25
    $region24: #{tpu_custom_call.1} parent=1 // pred_region
      _
    $region25: #{tpu_custom_call.1} parent=1 // pred_fallthru
      _
    // Predicated region
    $region26: #{tpu_custom_call.1} parent=1 // pred_check
      _
    $region27: #{tpu_custom_call.1} parent=1 // pred_check_branch
      %52 = sbr.rel (0) target = $region29
    $region28: #{tpu_custom_call.1} parent=1 // pred_region
      _
    $region29: #{tpu_custom_call.1} parent=1 // pred_fallthru
      _
    // Predicated region
    $region30: #{tpu_custom_call.1} parent=1 // pred_check
      _
    $region31: #{tpu_custom_call.1} parent=1 // pred_check_branch
      %54 = sbr.rel (0) target = $region33
    $region32: #{tpu_custom_call.1} parent=1 // pred_region
      _
    $region33: #{tpu_custom_call.1} parent=1 // pred_fallthru
      _
    // Predicated region
    $region34: #{tpu_custom_call.1} parent=1 // pred_check
      _
    $region35: #{tpu_custom_call.1} parent=1 // pred_check_branch
      %56 = sbr.rel (0) target = $region37
    $region36: #{tpu_custom_call.1} parent=1 // pred_region
      _
    $region37: #{tpu_custom_call.1} parent=1 // pred_fallthru
      _
    // Predicated region
    $region38: #{tpu_custom_call.1} parent=1 // pred_check
      _
    $region39: #{tpu_custom_call.1} parent=1 // pred_check_branch
      %58 = sbr.rel (0) target = $region41
    $region40: #{tpu_custom_call.1} parent=1 // pred_region
      %60 = dma.done [#allocation3], 3584
    $region41: #{tpu_custom_call.1} parent=1 // pred_fallthru
      _
    // Predicated region
    $region42: #{tpu_custom_call.1} parent=1 // pred_check
      _
    $region43: #{tpu_custom_call.1} parent=1 // pred_check_branch
      %62 = sbr.rel (0) target = $region45
    $region44: #{tpu_custom_call.1} parent=1 // pred_region
      %64 = dma.done [#allocation6], 6272
    $region45: #{tpu_custom_call.1} parent=1 // pred_fallthru
      _
    %v66 = vld [vmem:[#allocation2] sm:$0xff]
    %v67 = vld [vmem:[#allocation2 + $0x8] sm:$0xff]
    %v68 = vld [vmem:[#allocation2 + $0x10] sm:$0xff]
    %v69 = vld [vmem:[#allocation2 + $0x18] sm:$0xff]
    %v70 = vld [vmem:[#allocation2 + $0x20] sm:$0xff]
    %v71 = vld [vmem:[#allocation2 + $0x28] sm:$0xff]
    %v72 = vld [vmem:[#allocation2 + $0x30] sm:$0xff]
    %v73 = vld [vmem:[#allocation2 + $0x38] sm:$0xff]
    %v74 = vld [vmem:[#allocation2 + $0x40] sm:$0xff]
    %v75 = vld [vmem:[#allocation2 + $0x48] sm:$0xff]
    %v76 = vld [vmem:[#allocation2 + $0x50] sm:$0xff]
    %v77 = vld [vmem:[#allocation2 + $0x58] sm:$0xff]
    %v78 = vld [vmem:[#allocation2 + $0x60] sm:$0xff]
    %v79 = vld [vmem:[#allocation2 + $0x68] sm:$0xff]
    %v80 = vld [vmem:[#allocation2 + $0x70] sm:$0xff]
    %v81 = vld [vmem:[#allocation2 + $0x78] sm:$0xff]
    %v82 = vld [vmem:[#allocation2 + $0x80] sm:$0xff]
    %v83 = vld [vmem:[#allocation2 + $0x88] sm:$0xff]
    %v84 = vld [vmem:[#allocation2 + $0x90] sm:$0xff]
    %v85 = vld [vmem:[#allocation2 + $0x98] sm:$0xff]
    %v86 = vld [vmem:[#allocation2 + $0xa0] sm:$0xff]
    %v87 = vld [vmem:[#allocation2 + $0xa8] sm:$0xff]
    %v88 = vld [vmem:[#allocation2 + $0xb0] sm:$0xff]
    %v89 = vld [vmem:[#allocation2 + $0xb8] sm:$0xff]
    %v90 = vld [vmem:[#allocation2 + $0xc0] sm:$0xff]
    %v91 = vld [vmem:[#allocation2 + $0xc8] sm:$0xff]
    %v92 = vld [vmem:[#allocation2 + $0xd0] sm:$0xff]
    %v93 = vld [vmem:[#allocation2 + $0xd8] sm:$0xff]
    %v94 = vpack.c.bf16 %v73, %v66
    %v95 = vpack.c.bf16 %v74, %v67
    %v96 = vpack.c.bf16 %v75, %v68
    %v97 = vpack.c.bf16 %v76, %v69
    %v98 = vpack.c.bf16 %v77, %v70
    %v99 = vpack.c.bf16 %v78, %v71
    %v100 = vpack.c.bf16 %v79, %v72
    %v101 = vpack.c.bf16 %v87, %v80
    %v102 = vpack.c.bf16 %v88, %v81
    %v103 = vpack.c.bf16 %v89, %v82
    %v104 = vpack.c.bf16 %v90, %v83
    %v105 = vpack.c.bf16 %v91, %v84
    %v106 = vpack.c.bf16 %v92, %v85
    %v107 = vpack.c.bf16 %v93, %v86
    %v108 = vld [vmem:[#allocation5] sm:$0xf]
    %v109 = vld [vmem:[#allocation5 + $0x4] sm:$0xf]
    %v110 = vld [vmem:[#allocation5 + $0x8] sm:$0xf]
    %v111 = vld [vmem:[#allocation5 + $0xc] sm:$0xf]
    %v112 = vld [vmem:[#allocation5 + $0x10] sm:$0xf]
    %v113 = vld [vmem:[#allocation5 + $0x14] sm:$0xf]
    %v114 = vld [vmem:[#allocation5 + $0x18] sm:$0xf]
    %v115 = vld [vmem:[#allocation5 + $0x1c] sm:$0xf]
    %v116 = vld [vmem:[#allocation5 + $0x20] sm:$0xf]
    %v117 = vld [vmem:[#allocation5 + $0x24] sm:$0xf]
    %v118 = vld [vmem:[#allocation5 + $0x28] sm:$0xf]
    %v119 = vld [vmem:[#allocation5 + $0x2c] sm:$0xf]
    %v120 = vld [vmem:[#allocation5 + $0x30] sm:$0xf]
    %v121 = vld [vmem:[#allocation5 + $0x34] sm:$0xf]
    %v122 = vld [vmem:[#allocation5 + $0x38] sm:$0xf]
    %v123 = vld [vmem:[#allocation5 + $0x3c] sm:$0xf]
    %v124 = vld [vmem:[#allocation5 + $0x40] sm:$0xf]
    %v125 = vld [vmem:[#allocation5 + $0x44] sm:$0xf]
    %v126 = vld [vmem:[#allocation5 + $0x48] sm:$0xf]
    %v127 = vld [vmem:[#allocation5 + $0x4c] sm:$0xf]
    %v128 = vld [vmem:[#allocation5 + $0x50] sm:$0xf]
    %v129 = vld [vmem:[#allocation5 + $0x54] sm:$0xf]
    %v130 = vld [vmem:[#allocation5 + $0x58] sm:$0xf]
    %v131 = vld [vmem:[#allocation5 + $0x5c] sm:$0xf]
    %v132 = vld [vmem:[#allocation5 + $0x60] sm:$0xf]
    %v133 = vld [vmem:[#allocation5 + $0x64] sm:$0xf]
    %v134 = vld [vmem:[#allocation5 + $0x68] sm:$0xf]
    %v135 = vld [vmem:[#allocation5 + $0x6c] sm:$0xf]
    %v136 = vld [vmem:[#allocation5 + $0x70] sm:$0xf]
    %v137 = vld [vmem:[#allocation5 + $0x74] sm:$0xf]
    %v138 = vld [vmem:[#allocation5 + $0x78] sm:$0xf]
    %v139 = vld [vmem:[#allocation5 + $0x7c] sm:$0xf]
    %v140 = vld [vmem:[#allocation5 + $0x80] sm:$0xf]
    %v141 = vld [vmem:[#allocation5 + $0x84] sm:$0xf]
    %v142 = vld [vmem:[#allocation5 + $0x88] sm:$0xf]
    %v143 = vld [vmem:[#allocation5 + $0x8c] sm:$0xf]
    %v144 = vld [vmem:[#allocation5 + $0x90] sm:$0xf]
    %v145 = vld [vmem:[#allocation5 + $0x94] sm:$0xf]
    %v146 = vld [vmem:[#allocation5 + $0x98] sm:$0xf]
    %v147 = vld [vmem:[#allocation5 + $0x9c] sm:$0xf]
    %v148 = vld [vmem:[#allocation5 + $0xa0] sm:$0xf]
    %v149 = vld [vmem:[#allocation5 + $0xa4] sm:$0xf]
    %v150 = vld [vmem:[#allocation5 + $0xa8] sm:$0xf]
    %v151 = vld [vmem:[#allocation5 + $0xac] sm:$0xf]
    %v152 = vld [vmem:[#allocation5 + $0xb0] sm:$0xf]
    %v153 = vld [vmem:[#allocation5 + $0xb4] sm:$0xf]
    %v154 = vld [vmem:[#allocation5 + $0xb8] sm:$0xf]
    %v155 = vld [vmem:[#allocation5 + $0xbc] sm:$0xf]
    %v156 = vld [vmem:[#allocation5 + $0xc0] sm:$0xf]
    %v157 = vld [vmem:[#allocation5 + $0xc4] sm:$0xf]
    %v158 = vld [vmem:[#allocation5 + $0xc8] sm:$0xf]
    %v159 = vld [vmem:[#allocation5 + $0xcc] sm:$0xf]
    %v160 = vld [vmem:[#allocation5 + $0xd0] sm:$0xf]
    %v161 = vld [vmem:[#allocation5 + $0xd4] sm:$0xf]
    %v162 = vld [vmem:[#allocation5 + $0xd8] sm:$0xf]
    %v163 = vld [vmem:[#allocation5 + $0xdc] sm:$0xf]
    %v164 = vld [vmem:[#allocation5 + $0xe0] sm:$0xf]
    %v165 = vld [vmem:[#allocation5 + $0xe4] sm:$0xf]
    %v166 = vld [vmem:[#allocation5 + $0xe8] sm:$0xf]
    %v167 = vld [vmem:[#allocation5 + $0xec] sm:$0xf]
    %v168 = vld [vmem:[#allocation5 + $0xf0] sm:$0xf]
    %v169 = vld [vmem:[#allocation5 + $0xf4] sm:$0xf]
    %v170 = vld [vmem:[#allocation5 + $0xf8] sm:$0xf]
    %v171 = vld [vmem:[#allocation5 + $0xfc] sm:$0xf]
    %v172 = vld [vmem:[#allocation5 + $0x100] sm:$0xf]
    %v173 = vld [vmem:[#allocation5 + $0x104] sm:$0xf]
    %v174 = vld [vmem:[#allocation5 + $0x108] sm:$0xf]
    %v175 = vld [vmem:[#allocation5 + $0x10c] sm:$0xf]
    %v176 = vld [vmem:[#allocation5 + $0x110] sm:$0xf]
    %v177 = vld [vmem:[#allocation5 + $0x114] sm:$0xf]
    %v178 = vld [vmem:[#allocation5 + $0x118] sm:$0xf]
    %v179 = vld [vmem:[#allocation5 + $0x11c] sm:$0xf]
    %v180 = vld [vmem:[#allocation5 + $0x120] sm:$0xf]
    %v181 = vld [vmem:[#allocation5 + $0x124] sm:$0xf]
    %v182 = vld [vmem:[#allocation5 + $0x128] sm:$0xf]
    %v183 = vld [vmem:[#allocation5 + $0x12c] sm:$0xf]
    %v184 = vld [vmem:[#allocation5 + $0x130] sm:$0xf]
    %v185 = vld [vmem:[#allocation5 + $0x134] sm:$0xf]
    %v186 = vld [vmem:[#allocation5 + $0x138] sm:$0xf]
    %v187 = vld [vmem:[#allocation5 + $0x13c] sm:$0xf]
    %v188 = vld [vmem:[#allocation5 + $0x140] sm:$0xf]
    %v189 = vld [vmem:[#allocation5 + $0x144] sm:$0xf]
    %v190 = vld [vmem:[#allocation5 + $0x148] sm:$0xf]
    %v191 = vld [vmem:[#allocation5 + $0x14c] sm:$0xf]
    %v192 = vld [vmem:[#allocation5 + $0x150] sm:$0xf]
    %v193 = vld [vmem:[#allocation5 + $0x154] sm:$0xf]
    %v194 = vld [vmem:[#allocation5 + $0x158] sm:$0xf]
    %v195 = vld [vmem:[#allocation5 + $0x15c] sm:$0xf]
    %v196 = vld [vmem:[#allocation5 + $0x160] sm:$0xf]
    %v197 = vld [vmem:[#allocation5 + $0x164] sm:$0xf]
    %v198 = vld [vmem:[#allocation5 + $0x168] sm:$0xf]
    %v199 = vld [vmem:[#allocation5 + $0x16c] sm:$0xf]
    %v200 = vld [vmem:[#allocation5 + $0x170] sm:$0xf]
    %v201 = vld [vmem:[#allocation5 + $0x174] sm:$0xf]
    %v202 = vld [vmem:[#allocation5 + $0x178] sm:$0xf]
    %v203 = vld [vmem:[#allocation5 + $0x17c] sm:$0xf]
    %v204 = vld [vmem:[#allocation5 + $0x180] sm:$0xf]
    %v205 = vld [vmem:[#allocation5 + $0x184] sm:$0xf]
    %v206 = vld [vmem:[%s2] sm:$0x1]
    %v208 = vperm.slane %v206, 0
    %v308 = vunpack.c.l.b16 %v108
    %v309 = vunpack.c.l.b16 %v109
    %v310 = vunpack.c.l.b16 %v110
    %v311 = vunpack.c.l.b16 %v111
    %v312 = vunpack.c.l.b16 %v112
    %v313 = vunpack.c.l.b16 %v113
    %v314 = vunpack.c.l.b16 %v114
    %v315 = vunpack.c.l.b16 %v115
    %v316 = vunpack.c.l.b16 %v116
    %v317 = vunpack.c.l.b16 %v117
    %v318 = vunpack.c.l.b16 %v118
    %v319 = vunpack.c.l.b16 %v119
    %v320 = vunpack.c.l.b16 %v120
    %v321 = vunpack.c.l.b16 %v121
    %v322 = vunpack.c.l.b16 %v122
    %v323 = vunpack.c.l.b16 %v123
    %v324 = vunpack.c.l.b16 %v124
    %v325 = vunpack.c.l.b16 %v125
    %v326 = vunpack.c.l.b16 %v126
    %v327 = vunpack.c.l.b16 %v127
    %v328 = vunpack.c.l.b16 %v128
    %v329 = vunpack.c.l.b16 %v129
    %v330 = vunpack.c.l.b16 %v130
    %v331 = vunpack.c.l.b16 %v131
    %v332 = vunpack.c.l.b16 %v132
    %v333 = vunpack.c.l.b16 %v133
    %v334 = vunpack.c.l.b16 %v134
    %v335 = vunpack.c.l.b16 %v135
    %v336 = vunpack.c.l.b16 %v136
    %v337 = vunpack.c.l.b16 %v137
    %v338 = vunpack.c.l.b16 %v138
    %v339 = vunpack.c.l.b16 %v139
    %v340 = vunpack.c.l.b16 %v140
    %v341 = vunpack.c.l.b16 %v141
    %v342 = vunpack.c.l.b16 %v142
    %v343 = vunpack.c.l.b16 %v143
    %v344 = vunpack.c.l.b16 %v144
    %v345 = vunpack.c.l.b16 %v145
    %v346 = vunpack.c.l.b16 %v146
    %v347 = vunpack.c.l.b16 %v147
    %v348 = vunpack.c.l.b16 %v148
    %v349 = vunpack.c.l.b16 %v149
    %v350 = vunpack.c.l.b16 %v150
    %v351 = vunpack.c.l.b16 %v151
    %v352 = vunpack.c.l.b16 %v152
    %v353 = vunpack.c.l.b16 %v153
    %v354 = vunpack.c.l.b16 %v154
    %v355 = vunpack.c.l.b16 %v155
    %v356 = vunpack.c.l.b16 %v156
    %v357 = vunpack.c.l.b16 %v157
    %v358 = vunpack.c.l.b16 %v158
    %v359 = vunpack.c.l.b16 %v159
    %v360 = vunpack.c.l.b16 %v160
    %v361 = vunpack.c.l.b16 %v161
    %v362 = vunpack.c.l.b16 %v162
    %v363 = vunpack.c.l.b16 %v163
    %v364 = vunpack.c.l.b16 %v164
    %v365 = vunpack.c.l.b16 %v165
    %v366 = vunpack.c.l.b16 %v166
    %v367 = vunpack.c.l.b16 %v167
    %v368 = vunpack.c.l.b16 %v168
    %v369 = vunpack.c.l.b16 %v169
    %v370 = vunpack.c.l.b16 %v170
    %v371 = vunpack.c.l.b16 %v171
    %v372 = vunpack.c.l.b16 %v172
    %v373 = vunpack.c.l.b16 %v173
    %v374 = vunpack.c.l.b16 %v174
    %v375 = vunpack.c.l.b16 %v175
    %v376 = vunpack.c.l.b16 %v176
    %v377 = vunpack.c.l.b16 %v177
    %v378 = vunpack.c.l.b16 %v178
    %v379 = vunpack.c.l.b16 %v179
    %v380 = vunpack.c.l.b16 %v180
    %v381 = vunpack.c.l.b16 %v181
    %v382 = vunpack.c.l.b16 %v182
    %v383 = vunpack.c.l.b16 %v183
    %v384 = vunpack.c.l.b16 %v184
    %v385 = vunpack.c.l.b16 %v185
    %v386 = vunpack.c.l.b16 %v186
    %v387 = vunpack.c.l.b16 %v187
    %v388 = vunpack.c.l.b16 %v188
    %v389 = vunpack.c.l.b16 %v189
    %v390 = vunpack.c.l.b16 %v190
    %v391 = vunpack.c.l.b16 %v191
    %v392 = vunpack.c.l.b16 %v192
    %v393 = vunpack.c.l.b16 %v193
    %v394 = vunpack.c.l.b16 %v194
    %v395 = vunpack.c.l.b16 %v195
    %v396 = vunpack.c.l.b16 %v196
    %v397 = vunpack.c.l.b16 %v197
    %v398 = vunpack.c.l.b16 %v198
    %v399 = vunpack.c.l.b16 %v199
    %v400 = vunpack.c.l.b16 %v200
    %v401 = vunpack.c.l.b16 %v201
    %v402 = vunpack.c.l.b16 %v202
    %v403 = vunpack.c.l.b16 %v203
    %v404 = vunpack.c.l.b16 %v204
    %v405 = vunpack.c.l.b16 %v205
    %v406 = vpack.c.b16 %v309, %v308
    %v407 = vpack.c.b16 %v311, %v310
    %v408 = vpack.c.b16 %v313, %v312
    %v409 = vpack.c.b16 %v315, %v314
    %v410 = vpack.c.b16 %v317, %v316
    %v411 = vpack.c.b16 %v319, %v318
    %v412 = vpack.c.b16 %v321, %v320
    %v413 = vpack.c.b16 %v323, %v322
    %v414 = vpack.c.b16 %v325, %v324
    %v415 = vpack.c.b16 %v327, %v326
    %v416 = vpack.c.b16 %v329, %v328
    %v417 = vpack.c.b16 %v331, %v330
    %v418 = vpack.c.b16 %v333, %v332
    %v419 = vpack.c.b16 %v335, %v334
    %v420 = vpack.c.b16 %v337, %v336
    %v421 = vpack.c.b16 %v339, %v338
    %v422 = vpack.c.b16 %v341, %v340
    %v423 = vpack.c.b16 %v343, %v342
    %v424 = vpack.c.b16 %v345, %v344
    %v425 = vpack.c.b16 %v347, %v346
    %v426 = vpack.c.b16 %v349, %v348
    %v427 = vpack.c.b16 %v351, %v350
    %v428 = vpack.c.b16 %v353, %v352
    %v429 = vpack.c.b16 %v355, %v354
    %v430 = vpack.c.b16 %v357, %v356
    %v431 = vpack.c.b16 %v359, %v358
    %v432 = vpack.c.b16 %v361, %v360
    %v433 = vpack.c.b16 %v363, %v362
    %v434 = vpack.c.b16 %v365, %v364
    %v435 = vpack.c.b16 %v367, %v366
    %v436 = vpack.c.b16 %v369, %v368
    %v437 = vpack.c.b16 %v371, %v370
    %v438 = vpack.c.b16 %v373, %v372
    %v439 = vpack.c.b16 %v375, %v374
    %v440 = vpack.c.b16 %v377, %v376
    %v441 = vpack.c.b16 %v379, %v378
    %v442 = vpack.c.b16 %v381, %v380
    %v443 = vpack.c.b16 %v383, %v382
    %v444 = vpack.c.b16 %v385, %v384
    %v445 = vpack.c.b16 %v387, %v386
    %v446 = vpack.c.b16 %v389, %v388
    %v447 = vpack.c.b16 %v391, %v390
    %v448 = vpack.c.b16 %v393, %v392
    %v449 = vpack.c.b16 %v395, %v394
    %v450 = vpack.c.b16 %v397, %v396
    %v451 = vpack.c.b16 %v399, %v398
    %v452 = vpack.c.b16 %v401, %v400
    %v453 = vpack.c.b16 %v403, %v402
    %v454 = vpack.c.b16 %v405, %v404
    %vm504 = vcmask 130048
    %v506 = vsel %vm504, %v100, 0
    %v509 = vsel %vm504, %v107, 0
    %511 = vmatpush.bf16.msra.mxu0 %v413
    %512 = vmatpush.bf16.msra.mxu0 %v412
    %513 = vmatpush.bf16.msra.mxu0 %v411
    %514 = vmatpush.bf16.msra.mxu0 %v410
    %515 = vmatpush.bf16.msra.mxu0 %v409
    %516 = vmatpush.bf16.msra.mxu0 %v408
    %517 = vmatpush.bf16.msra.mxu0 %v407
    %518 = vmatpush.bf16.msra.mxu0 %v406
    %519 = vmatmul.bf16.gmra.mxu0 %v94
    %v520 = vpop.f32.mrf.mxu0
    %v521 = vadd.f32 %v208, %v520
    %v522 = vpop.f32.mrf.mxu0
    %v523 = vadd.f32 %v208, %v522
    %524 = vmatmul.bf16.gmra.mxu0 %v101
    %v525 = vpop.f32.mrf.mxu0
    %v526 = vadd.f32 %v208, %v525
    %v527 = vpop.f32.mrf.mxu0
    %v528 = vadd.f32 %v208, %v527
    %529 = vdwg.mxu0
    %530 = vmatpush.bf16.msra.mxu0 %v421
    %531 = vmatpush.bf16.msra.mxu0 %v420
    %532 = vmatpush.bf16.msra.mxu0 %v419
    %533 = vmatpush.bf16.msra.mxu0 %v418
    %534 = vmatpush.bf16.msra.mxu0 %v417
    %535 = vmatpush.bf16.msra.mxu0 %v416
    %536 = vmatpush.bf16.msra.mxu0 %v415
    %537 = vmatpush.bf16.msra.mxu0 %v414
    %538 = vmatmul.bf16.gmra.mxu0 %v95
    %v539 = vpop.f32.mrf.mxu0
    %v540 = vadd.f32 %v521, %v539
    %v541 = vpop.f32.mrf.mxu0
    %v542 = vadd.f32 %v523, %v541
    %543 = vmatmul.bf16.gmra.mxu0 %v102
    %v544 = vpop.f32.mrf.mxu0
    %v545 = vadd.f32 %v526, %v544
    %v546 = vpop.f32.mrf.mxu0
    %v547 = vadd.f32 %v528, %v546
    %548 = vdwg.mxu0
    %549 = vmatpush.bf16.msra.mxu0 %v429
    %550 = vmatpush.bf16.msra.mxu0 %v428
    %551 = vmatpush.bf16.msra.mxu0 %v427
    %552 = vmatpush.bf16.msra.mxu0 %v426
    %553 = vmatpush.bf16.msra.mxu0 %v425
    %554 = vmatpush.bf16.msra.mxu0 %v424
    %555 = vmatpush.bf16.msra.mxu0 %v423
    %556 = vmatpush.bf16.msra.mxu0 %v422
    %557 = vmatmul.bf16.gmra.mxu0 %v96
    %v558 = vpop.f32.mrf.mxu0
    %v559 = vadd.f32 %v540, %v558
    %v560 = vpop.f32.mrf.mxu0
    %v561 = vadd.f32 %v542, %v560
    %562 = vmatmul.bf16.gmra.mxu0 %v103
    %v563 = vpop.f32.mrf.mxu0
    %v564 = vadd.f32 %v545, %v563
    %v565 = vpop.f32.mrf.mxu0
    %v566 = vadd.f32 %v547, %v565
    %567 = vdwg.mxu0
    %568 = vmatpush.bf16.msra.mxu0 %v437
    %569 = vmatpush.bf16.msra.mxu0 %v436
    %570 = vmatpush.bf16.msra.mxu0 %v435
    %571 = vmatpush.bf16.msra.mxu0 %v434
    %572 = vmatpush.bf16.msra.mxu0 %v433
    %573 = vmatpush.bf16.msra.mxu0 %v432
    %574 = vmatpush.bf16.msra.mxu0 %v431
    %575 = vmatpush.bf16.msra.mxu0 %v430
    %576 = vmatmul.bf16.gmra.mxu0 %v97
    %v577 = vpop.f32.mrf.mxu0
    %v578 = vadd.f32 %v559, %v577
    %v579 = vpop.f32.mrf.mxu0
    %v580 = vadd.f32 %v561, %v579
    %581 = vmatmul.bf16.gmra.mxu0 %v104
    %v582 = vpop.f32.mrf.mxu0
    %v583 = vadd.f32 %v564, %v582
    %v584 = vpop.f32.mrf.mxu0
    %v585 = vadd.f32 %v566, %v584
    %586 = vdwg.mxu0
    %587 = vmatpush.bf16.msra.mxu0 %v445
    %588 = vmatpush.bf16.msra.mxu0 %v444
    %589 = vmatpush.bf16.msra.mxu0 %v443
    %590 = vmatpush.bf16.msra.mxu0 %v442
    %591 = vmatpush.bf16.msra.mxu0 %v441
    %592 = vmatpush.bf16.msra.mxu0 %v440
    %593 = vmatpush.bf16.msra.mxu0 %v439
    %594 = vmatpush.bf16.msra.mxu0 %v438
    %595 = vmatmul.bf16.gmra.mxu0 %v98
    %v596 = vpop.f32.mrf.mxu0
    %v597 = vadd.f32 %v578, %v596
    %v598 = vpop.f32.mrf.mxu0
    %v599 = vadd.f32 %v580, %v598
    %600 = vmatmul.bf16.gmra.mxu0 %v105
    %v601 = vpop.f32.mrf.mxu0
    %v602 = vadd.f32 %v583, %v601
    %v603 = vpop.f32.mrf.mxu0
    %v604 = vadd.f32 %v585, %v603
    %605 = vdwg.mxu0
    %606 = vmatpush.bf16.msra.mxu0 %v453
    %607 = vmatpush.bf16.msra.mxu0 %v452
    %608 = vmatpush.bf16.msra.mxu0 %v451
    %609 = vmatpush.bf16.msra.mxu0 %v450
    %610 = vmatpush.bf16.msra.mxu0 %v449
    %611 = vmatpush.bf16.msra.mxu0 %v448
    %612 = vmatpush.bf16.msra.mxu0 %v447
    %613 = vmatpush.bf16.msra.mxu0 %v446
    %614 = vmatmul.bf16.gmra.mxu0 %v99
    %v615 = vpop.f32.mrf.mxu0
    %v616 = vadd.f32 %v597, %v615
    %v617 = vpop.f32.mrf.mxu0
    %v618 = vadd.f32 %v599, %v617
    %619 = vmatmul.bf16.gmra.mxu0 %v106
    %v620 = vpop.f32.mrf.mxu0
    %v621 = vadd.f32 %v602, %v620
    %v622 = vpop.f32.mrf.mxu0
    %v623 = vadd.f32 %v604, %v622
    %624 = vdwg.mxu0
    %625 = vmatpush.bf16.msra.mxu0 0
    %626 = vmatpush.bf16.msra.mxu0 0
    %627 = vmatpush.bf16.msra.mxu0 0
    %628 = vmatpush.bf16.msra.mxu0 0
    %629 = vmatpush.bf16.msra.mxu0 0
    %630 = vmatpush.bf16.msra.mxu0 0
    %631 = vmatpush.bf16.msra.mxu0 0
    %632 = vmatpush.bf16.msra.mxu0 %v454
    %633 = vmatmul.bf16.gmra.mxu0 %v506
    %v634 = vpop.f32.mrf.mxu0
    %v635 = vadd.f32 %v616, %v634
    %v636 = vpop.f32.mrf.mxu0
    %v637 = vadd.f32 %v618, %v636
    %638 = vmatmul.bf16.gmra.mxu0 %v509
    %v639 = vpop.f32.mrf.mxu0
    %v640 = vadd.f32 %v621, %v639
    %v641 = vpop.f32.mrf.mxu0
    %v642 = vadd.f32 %v623, %v641
    %643 = vdwg.mxu0
    %v644 = vmax.f32 %v635, 0.0
    %v645 = vmax.f32 %v637, 0.0
    %v646 = vmax.f32 %v640, 0.0
    %v647 = vmax.f32 %v642, 0.0
    %v648 = vpack.c.bf16 %v645, %v644
    %v649 = vpack.c.bf16 %v647, %v646
    %v650 = vld [vmem:[%s3] sm:$0xf]
    %v651 = vld [vmem:[%s3 + $0x4] sm:$0xf]
    %v652 = vld [vmem:[%s3 + $0x8] sm:$0xf]
    %v653 = vld [vmem:[%s3 + $0xc] sm:$0xf]
    %v654 = vld [vmem:[%s3 + $0x10] sm:$0xf]
    %v655 = vld [vmem:[%s3 + $0x14] sm:$0xf]
    %v656 = vld [vmem:[%s3 + $0x18] sm:$0xf]
    %v657 = vld [vmem:[%s3 + $0x1c] sm:$0xf]
    %v658 = vld [vmem:[%s3 + $0x20] sm:$0xf]
    %v659 = vld [vmem:[%s3 + $0x24] sm:$0xf]
    %v660 = vld [vmem:[%s3 + $0x28] sm:$0xf]
    %v661 = vld [vmem:[%s3 + $0x2c] sm:$0xf]
    %v662 = vld [vmem:[%s3 + $0x30] sm:$0xf]
    %v663 = vld [vmem:[%s3 + $0x34] sm:$0xf]
    %v664 = vld [vmem:[%s3 + $0x38] sm:$0xf]
    %v665 = vld [vmem:[%s3 + $0x3c] sm:$0xf]
    %v666 = vld [vmem:[%s4] sm:$0x1]
    %v668 = vperm.slane %v666, 0
    %v686 = vunpack.c.l.b16 %v650
    %v687 = vunpack.c.l.b16 %v651
    %v688 = vunpack.c.l.b16 %v652
    %v689 = vunpack.c.l.b16 %v653
    %v690 = vunpack.c.l.b16 %v654
    %v691 = vunpack.c.l.b16 %v655
    %v692 = vunpack.c.l.b16 %v656
    %v693 = vunpack.c.l.b16 %v657
    %v694 = vunpack.c.l.b16 %v658
    %v695 = vunpack.c.l.b16 %v659
    %v696 = vunpack.c.l.b16 %v660
    %v697 = vunpack.c.l.b16 %v661
    %v698 = vunpack.c.l.b16 %v662
    %v699 = vunpack.c.l.b16 %v663
    %v700 = vunpack.c.l.b16 %v664
    %v701 = vunpack.c.l.b16 %v665
    %v702 = vpack.c.b16 %v687, %v686
    %v703 = vpack.c.b16 %v689, %v688
    %v704 = vpack.c.b16 %v691, %v690
    %v705 = vpack.c.b16 %v693, %v692
    %v706 = vpack.c.b16 %v695, %v694
    %v707 = vpack.c.b16 %v697, %v696
    %v708 = vpack.c.b16 %v699, %v698
    %v709 = vpack.c.b16 %v701, %v700
    %718 = vmatpush.bf16.msra.mxu0 %v709
    %719 = vmatpush.bf16.msra.mxu0 %v708
    %720 = vmatpush.bf16.msra.mxu0 %v707
    %721 = vmatpush.bf16.msra.mxu0 %v706
    %722 = vmatpush.bf16.msra.mxu0 %v705
    %723 = vmatpush.bf16.msra.mxu0 %v704
    %724 = vmatpush.bf16.msra.mxu0 %v703
    %725 = vmatpush.bf16.msra.mxu0 %v702
    %726 = vmatmul.bf16.gmra.mxu0 %v648
    %v727 = vpop.f32.mrf.mxu0
    %v728 = vadd.f32 %v668, %v727
    %v729 = vpop.f32.mrf.mxu0
    %v730 = vadd.f32 %v668, %v729
    %731 = vmatmul.bf16.gmra.mxu0 %v649
    %v732 = vpop.f32.mrf.mxu0
    %v733 = vadd.f32 %v668, %v732
    %v734 = vpop.f32.mrf.mxu0
    %v735 = vadd.f32 %v668, %v734
    %736 = vdwg.mxu0
    %v737 = vmax.f32 %v728, 0.0
    %v738 = vmax.f32 %v730, 0.0
    %v739 = vmax.f32 %v733, 0.0
    %v740 = vmax.f32 %v735, 0.0
    %v741 = vpack.c.bf16 %v738, %v737
    %v742 = vpack.c.bf16 %v740, %v739
    %v743 = vld [vmem:[%s5] sm:$0xf]
    %v744 = vld [vmem:[%s5 + $0x4] sm:$0xf]
    %v745 = vld [vmem:[%s5 + $0x8] sm:$0xf]
    %v746 = vld [vmem:[%s5 + $0xc] sm:$0xf]
    %v747 = vld [vmem:[%s5 + $0x10] sm:$0xf]
    %v748 = vld [vmem:[%s5 + $0x14] sm:$0xf]
    %v749 = vld [vmem:[%s5 + $0x18] sm:$0xf]
    %v750 = vld [vmem:[%s5 + $0x1c] sm:$0xf]
    %v751 = vld [vmem:[%s6] sm:$0x1]
    %v753 = vperm.slane %v751, 0
    %v763 = vunpack.c.l.b16 %v743
    %v764 = vunpack.c.l.b16 %v744
    %v765 = vunpack.c.l.b16 %v745
    %v766 = vunpack.c.l.b16 %v746
    %v767 = vunpack.c.l.b16 %v747
    %v768 = vunpack.c.l.b16 %v748
    %v769 = vunpack.c.l.b16 %v749
    %v770 = vunpack.c.l.b16 %v750
    %v771 = vpack.c.b16 %v764, %v763
    %v772 = vpack.c.b16 %v766, %v765
    %v773 = vpack.c.b16 %v768, %v767
    %v774 = vpack.c.b16 %v770, %v769
    %vm779 = vcmask 523264
    %v781 = vsel %vm779, %v741, 0
    %v784 = vsel %vm779, %v742, 0
    %786 = vmatpush.bf16.msra.mxu0 0
    %787 = vmatpush.bf16.msra.mxu0 0
    %788 = vmatpush.bf16.msra.mxu0 0
    %789 = vmatpush.bf16.msra.mxu0 0
    %790 = vmatpush.bf16.msra.mxu0 %v774
    %791 = vmatpush.bf16.msra.mxu0 %v773
    %792 = vmatpush.bf16.msra.mxu0 %v772
    %793 = vmatpush.bf16.msra.mxu0 %v771
    %794 = vmatmul.bf16.gmra.mxu0 %v781
    %v795 = vpop.f32.mrf.mxu0
    %v796 = vadd.f32 %v753, %v795
    %v797 = vpop.f32.mrf.mxu0
    %v798 = vadd.f32 %v753, %v797
    %799 = vmatmul.bf16.gmra.mxu0 %v784
    %v800 = vpop.f32.mrf.mxu0
    %v801 = vadd.f32 %v753, %v800
    %v802 = vpop.f32.mrf.mxu0
    %v803 = vadd.f32 %v753, %v802
    %804 = vdwg.mxu0
    %v805 = vmax.f32 %v796, 0.0
    %v806 = vmax.f32 %v798, 0.0
    %v807 = vmax.f32 %v801, 0.0
    %v808 = vmax.f32 %v803, 0.0
    %v809 = vpack.c.bf16 %v806, %v805
    %v810 = vpack.c.bf16 %v808, %v807
    %v811 = vld [vmem:[%s7] sm:$0xf]
    %v812 = vld [vmem:[%s7 + $0x4] sm:$0xf]
    %v813 = vld [vmem:[%s7 + $0x8] sm:$0xf]
    %v814 = vld [vmem:[%s7 + $0xc] sm:$0xf]
    %v815 = vld [vmem:[%s8] sm:$0x1]
    %v817 = vperm.slane %v815, 0
    %v823 = vunpack.c.l.b16 %v811
    %v824 = vunpack.c.l.b16 %v812
    %v825 = vunpack.c.l.b16 %v813
    %v826 = vunpack.c.l.b16 %v814
    %v827 = vpack.c.b16 %v824, %v823
    %v828 = vpack.c.b16 %v826, %v825
    %vm831 = vcmask 261120
    %v833 = vsel %vm831, %v809, 0
    %v836 = vsel %vm831, %v810, 0
    %838 = vmatpush.bf16.msra.mxu0 0
    %839 = vmatpush.bf16.msra.mxu0 0
    %840 = vmatpush.bf16.msra.mxu0 0
    %841 = vmatpush.bf16.msra.mxu0 0
    %842 = vmatpush.bf16.msra.mxu0 0
    %843 = vmatpush.bf16.msra.mxu0 0
    %844 = vmatpush.bf16.msra.mxu0 %v828
    %845 = vmatpush.bf16.msra.mxu0 %v827
    %846 = vmatmul.bf16.gmra.mxu0 %v833
    %v847 = vpop.f32.mrf.mxu0
    %v848 = vadd.f32 %v817, %v847
    %v849 = vpop.f32.mrf.mxu0
    %v850 = vadd.f32 %v817, %v849
    %851 = vmatmul.bf16.gmra.mxu0 %v836
    %v852 = vpop.f32.mrf.mxu0
    %v853 = vadd.f32 %v817, %v852
    %v854 = vpop.f32.mrf.mxu0
    %v855 = vadd.f32 %v817, %v854
    %856 = vdwg.mxu0
    %v857 = vpack.c.bf16 %v848, %v848
    %v858 = vpack.c.bf16 %v850, %v850
    %v859 = vpack.c.bf16 %v853, %v853
    %v860 = vpack.c.bf16 %v855, %v855
    %861 = vst [vmem:[#allocation7] sm:$0xf] %v857
    %862 = vst [vmem:[#allocation7 + $0x4] sm:$0xf] %v858
    %863 = vst [vmem:[#allocation7 + $0x8] sm:$0xf] %v859
    %864 = vst [vmem:[#allocation7 + $0xc] sm:$0xf] %v860
    // Predicated region
    $region46: #{tpu_custom_call.1} parent=1 // pred_check
      _
    $region47: #{tpu_custom_call.1} parent=1 // pred_check_branch
      %866 = sbr.rel (0) target = $region49
    $region48: #{tpu_custom_call.1} parent=1 // pred_region
      %868 = vsyncadd [#allocation4], 0
      %s869 = sshll.u32 [#allocation7], 4
      %s870 = int_to_ptr.vmem [resolvable:$true] %s869
      %s871 = sshll.u32 %s9, 4
      %s872 = int_to_ptr.hbm [resolvable:$true] %s871
      %877 = dma.vmem_to_hbm [thread:$0]  %s870, 256, %s872, [#allocation4], 64, 64, 4
    $region49: #{tpu_custom_call.1} parent=1 // pred_fallthru
      _
    // Predicated region
    $region50: #{tpu_custom_call.1} parent=1 // pred_check
      _
    $region51: #{tpu_custom_call.1} parent=1 // pred_check_branch
      %879 = sbr.rel (0) target = $region53
    $region52: #{tpu_custom_call.1} parent=1 // pred_region
      %881 = dma.done [#allocation4], 256
    $region53: #{tpu_custom_call.1} parent=1 // pred_fallthru
      _
    %882 = vsyncpa [#allocation3], 1
    %883 = vsyncpa [#allocation6], 1
    %884 = vsyncpa [#allocation4], 1

</llo_original>
